<compile_context>
chip_gen: v7x
topology: tpu7x:2x2x1
jax: 0.10.0
libtpu: 0.0.40
codegen_flags: <defaults>
</compile_context>

<pallas_src>
import functools

import jax
import jax.numpy as jnp
from jax.experimental import pallas as pl
from jax.experimental.pallas import tpu as pltpu


def _ecommerce_kernel(x_ref, w1_ref, b1_ref, wpf_ref, bpf_ref, o_ref):
    # shared layer: Linear(10 -> 64) + ReLU  (dropout = identity in eval mode)
    h = jnp.dot(x_ref[...], w1_ref[...], preferred_element_type=jnp.float32)
    h = jnp.maximum(h + b1_ref[...], 0.0)

    # fused (platform-specific Linear(64->32)) o (final Linear(32->1)) + sigmoid
    z = jnp.dot(h.astype(jnp.bfloat16), wpf_ref[...],
                preferred_element_type=jnp.float32)
    z = z + bpf_ref[...]
    o_ref[...] = jax.nn.sigmoid(z).astype(o_ref.dtype)


@functools.partial(jax.jit, static_argnames=("platform", "tile_b"))
def ecommerce_forward(x, params, platform="platformA", tile_b=1024):
    """x: (B, input_dim) float32. Returns (B, 1) float32."""
    # --- wrapper-side weight prep (one-time, tiny) -------------------------
    w1 = params["shared_w"].T.astype(jnp.bfloat16)            # (10, 64)
    b1 = params["shared_b"][None, :].astype(jnp.float32)      # (1, 64)

    wp = params[f"{platform}_w"].T                            # (64, 32)  f32
    bp = params[f"{platform}_b"]                              # (32,)     f32
    w3 = params["final_w"].T                                  # (32, 1)   f32
    b3 = params["final_b"]                                    # (1,)      f32

    # Algebraic fusion of the two tail linears (no nonlinearity in between).
    w_pf = (wp @ w3).astype(jnp.bfloat16)                     # (64, 1)
    b_pf = (bp @ w3 + b3)[None, :].astype(jnp.float32)        # (1, 1)

    x_bf16 = x.astype(jnp.bfloat16)

    B, D = x.shape
    # Batch tile: multiple of 8 (sublane), capped at tile_b; partial final
    # block is handled by Pallas (padded reads / masked writes, rows are
    # independent so padding cannot contaminate valid rows).
    tb = min(int(tile_b), max(8, ((B + 7) // 8) * 8))
    grid = (pl.cdiv(B, tb),)

    resident = lambda shape: pl.BlockSpec(shape, lambda i: (0,) * len(shape))

    return pl.pallas_call(
        _ecommerce_kernel,
        out_shape=jax.ShapeDtypeStruct((B, 1), jnp.float32),
        grid=grid,
        in_specs=[
            pl.BlockSpec((tb, D), lambda i: (i, 0)),   # x: streamed per tile
            resident(w1.shape),                        # weights stay in VMEM
            resident(b1.shape),
            resident(w_pf.shape),
            resident(b_pf.shape),
        ],
        out_specs=pl.BlockSpec((tb, 1), lambda i: (i, 0)),
        compiler_params=pltpu.CompilerParams(
            dimension_semantics=("parallel",)),        # megacore on v7x
    )(x_bf16, w1, b1, w_pf, b_pf)


def init_params(key, input_dim=10):
    """Deterministic init mirroring nn.Linear default (uniform +/- 1/sqrt(fan_in))."""
    def linear(k, fan_in, fan_out):
        kw, kb = jax.random.split(k)
        bound = 1.0 / jnp.sqrt(fan_in)
        w = jax.random.uniform(kw, (fan_out, fan_in), jnp.float32, -bound, bound)
        b = jax.random.uniform(kb, (fan_out,), jnp.float32, -bound, bound)
        return w, b

    k1, k2, k3, k4 = jax.random.split(key, 4)
    sw, sb = linear(k1, input_dim, 64)
    aw, ab = linear(k2, 64, 32)
    bw, bb = linear(k3, 64, 32)
    fw, fb = linear(k4, 32, 1)
    return {
        "shared_w": sw, "shared_b": sb,
        "platformA_w": aw, "platformA_b": ab,
        "platformB_w": bw, "platformB_b": bb,
        "final_w": fw, "final_b": fb,
    }


def reference_forward(x, params, platform="platformA"):
    """Pure f32 reference matching the PyTorch module in eval mode."""
    h = jnp.maximum(x @ params["shared_w"].T + params["shared_b"], 0.0)
    h = h @ params[f"{platform}_w"].T + params[f"{platform}_b"]
    return jax.nn.sigmoid(h @ params["final_w"].T + params["final_b"])


if __name__ == "__main__":
    key = jax.random.PRNGKey(0)
    kp, kx1, kx2 = jax.random.split(key, 3)

    input_dim = 10
    params = init_params(kp, input_dim=input_dim)

    # Small batch: single grid step.
    batch = 8
    x = jax.random.normal(kx1, (batch, input_dim), jnp.float32)
    out_a = jax.block_until_ready(ecommerce_forward(x, params, platform="platformA"))
    out_b = jax.block_until_ready(ecommerce_forward(x, params, platform="platformB"))
    ref_a = reference_forward(x, params, platform="platformA")
    ref_b = reference_forward(x, params, platform="platformB")
    assert out_a.shape == (batch, 1) and out_b.shape == (batch, 1)
    # bf16 matmul operands => compare against f32 reference with loose tolerance.
    assert jnp.allclose(out_a, ref_a, atol=3e-2), float(jnp.max(jnp.abs(out_a - ref_a)))
    assert jnp.allclose(out_b, ref_b, atol=3e-2), float(jnp.max(jnp.abs(out_b - ref_b)))

    # Larger batch: exercises multi-step pipelined grid + partial final tile.
    batch2 = 2000
    x2 = jax.random.normal(kx2, (batch2, input_dim), jnp.float32)
    out2 = jax.block_until_ready(
        ecommerce_forward(x2, params, platform="platformA", tile_b=512))
    ref2 = reference_forward(x2, params, platform="platformA")
    assert out2.shape == (batch2, 1)
    assert jnp.allclose(out2, ref2, atol=3e-2), float(jnp.max(jnp.abs(out2 - ref2)))

    print("KERNEL_OK")
</pallas_src>

<mosaic_0001>
module attributes {stable_mosaic.version = 11 : i64} {
  func.func @_ecommerce_kernel(%arg0: i32, %arg1: memref<8x10xbf16, #tpu.memory_space<vmem>>, %arg2: memref<10x64xbf16, #tpu.memory_space<vmem>>, %arg3: memref<1x64xf32, #tpu.memory_space<vmem>>, %arg4: memref<64x1xbf16, #tpu.memory_space<vmem>>, %arg5: memref<1x1xf32, #tpu.memory_space<vmem>>, %arg6: memref<8x1xf32, #tpu.memory_space<vmem>>) attributes {dimension_semantics = [#tpu.dimension_semantics<parallel>], iteration_bounds = array<i64: 1>, scalar_prefetch = 0 : i64, scratch_operands = 0 : i64, tpu.core_type = #tpu.core_type<tc>, window_params = [{transform_indices = @transform_0, window_bounds = array<i64: 8, 10>}, {pipeline_mode = #tpu.pipeline_mode<synchronous>, transform_indices = @transform_1, window_bounds = array<i64: 10, 64>}, {pipeline_mode = #tpu.pipeline_mode<synchronous>, transform_indices = @transform_2, window_bounds = array<i64: 1, 64>}, {pipeline_mode = #tpu.pipeline_mode<synchronous>, transform_indices = @transform_3, window_bounds = array<i64: 64, 1>}, {pipeline_mode = #tpu.pipeline_mode<synchronous>, transform_indices = @transform_4, window_bounds = array<i64: 1, 1>}, {transform_indices = @transform_5, window_bounds = array<i64: 8, 1>}]} {
    %c0 = arith.constant 0 : index
    %c0_0 = arith.constant 0 : index
    %0 = vector.load %arg1[%c0, %c0_0] : memref<8x10xbf16, #tpu.memory_space<vmem>>, vector<8x10xbf16>
    %c0_1 = arith.constant 0 : index
    %c0_2 = arith.constant 0 : index
    %1 = vector.load %arg2[%c0_1, %c0_2] : memref<10x64xbf16, #tpu.memory_space<vmem>>, vector<10x64xbf16>
    %cst = arith.constant dense<0.000000e+00> : vector<8x64xf32>
    %2 = tpu.matmul %0, %1, %cst {dimension_numbers = #tpu.dot_dimension_numbers<[1], [0], [0], [1], [0, 0, 1, 1], [], []>} : vector<8x10xbf16>, vector<10x64xbf16>, vector<8x64xf32> -> vector<8x64xf32>
    %c0_3 = arith.constant 0 : index
    %c0_4 = arith.constant 0 : index
    %3 = vector.load %arg3[%c0_3, %c0_4] : memref<1x64xf32, #tpu.memory_space<vmem>>, vector<1x64xf32>
    %4 = vector.broadcast %3 : vector<1x64xf32> to vector<8x64xf32>
    %5 = arith.addf %2, %4 : vector<8x64xf32>
    %cst_5 = arith.constant 0.000000e+00 : f32
    %6 = vector.broadcast %cst_5 : f32 to vector<8x64xf32>
    %7 = arith.maximumf %5, %6 : vector<8x64xf32>
    %8 = arith.truncf %7 : vector<8x64xf32> to vector<8x64xbf16>
    %c0_6 = arith.constant 0 : index
    %c0_7 = arith.constant 0 : index
    %9 = vector.load %arg4[%c0_6, %c0_7] : memref<64x1xbf16, #tpu.memory_space<vmem>>, vector<64x1xbf16>
    %cst_8 = arith.constant dense<0.000000e+00> : vector<8x1xf32>
    %10 = tpu.matmul %8, %9, %cst_8 {dimension_numbers = #tpu.dot_dimension_numbers<[1], [0], [0], [1], [0, 0, 1, 1], [], []>} : vector<8x64xbf16>, vector<64x1xbf16>, vector<8x1xf32> -> vector<8x1xf32>
    %c0_9 = arith.constant 0 : index
    %c0_10 = arith.constant 0 : index
    %11 = vector.load %arg5[%c0_9, %c0_10] : memref<1x1xf32, #tpu.memory_space<vmem>>, vector<1x1xf32>
    %12 = vector.broadcast %11 : vector<1x1xf32> to vector<8x1xf32>
    %13 = arith.addf %10, %12 : vector<8x1xf32>
    %14 = arith.negf %13 : vector<8x1xf32>
    %15 = math.exp %14 : vector<8x1xf32>
    %cst_11 = arith.constant 1.000000e+00 : f32
    %16 = vector.broadcast %cst_11 : f32 to vector<8x1xf32>
    %17 = arith.addf %16, %15 : vector<8x1xf32>
    %18 = arith.divf %16, %17 : vector<8x1xf32>
    %c0_12 = arith.constant 0 : index
    %c0_13 = arith.constant 0 : index
    %19 = vector.load %arg6[%c0_12, %c0_13] : memref<8x1xf32, #tpu.memory_space<vmem>>, vector<8x1xf32>
    tpu.vector_store %arg6[%c0_12, %c0_13], %18 {strides = array<i32>} : memref<8x1xf32, #tpu.memory_space<vmem>>, vector<8x1xf32>,
    return
  }
  func.func @transform_0(%arg0: i32) -> (i32, i32) {
    %c0_i32 = arith.constant 0 : i32
    %c0_i32_0 = arith.constant 0 : i32
    return %arg0, %c0_i32 : i32, i32
  }
  func.func @transform_1(%arg0: i32) -> (i32, i32) {
    %c0_i32 = arith.constant 0 : i32
    %c0_i32_0 = arith.constant 0 : i32
    %c0_i32_1 = arith.constant 0 : i32
    return %c0_i32, %c0_i32_0 : i32, i32
  }
  func.func @transform_2(%arg0: i32) -> (i32, i32) {
    %c0_i32 = arith.constant 0 : i32
    %c0_i32_0 = arith.constant 0 : i32
    %c0_i32_1 = arith.constant 0 : i32
    return %c0_i32, %c0_i32_0 : i32, i32
  }
  func.func @transform_3(%arg0: i32) -> (i32, i32) {
    %c0_i32 = arith.constant 0 : i32
    %c0_i32_0 = arith.constant 0 : i32
    %c0_i32_1 = arith.constant 0 : i32
    return %c0_i32, %c0_i32_0 : i32, i32
  }
  func.func @transform_4(%arg0: i32) -> (i32, i32) {
    %c0_i32 = arith.constant 0 : i32
    %c0_i32_0 = arith.constant 0 : i32
    %c0_i32_1 = arith.constant 0 : i32
    return %c0_i32, %c0_i32_0 : i32, i32
  }
  func.func @transform_5(%arg0: i32) -> (i32, i32) {
    %c0_i32 = arith.constant 0 : i32
    %c0_i32_0 = arith.constant 0 : i32
    return %arg0, %c0_i32 : i32, i32
  }
}

</mosaic_0001>

<llo_original>
// kernel: ecommerce_forward.1
$region0: #{ecommerce_forward.1}
  #allocation0 [shape = 'u32[]', space=smem, size = 0x4, offset = 0x4, fixed_abs, tag = 'smem constant byte address 0x4 - core index']
  #allocation1 [shape = 'u32[144,128]{1,0:T(1,128)}', space=vmem, size = 0x12000, scoped, tag = 'internal scratch']
  #allocation2 [shape = 'f32[1,1]{1,0:T(1,128)S(1)}', space=vmem, size = 0x200, scoped, tag = 'scoped memory for ecommerce_forward.1']
  %s0 = inlined_call_operand.vmem [shape: bf16[8,10], index: 0, kind: input, shape index: {}]
  %s1 = inlined_call_operand.vmem [shape: bf16[10,64], index: 1, kind: input, shape index: {}]
  %s2 = inlined_call_operand.vmem [shape: f32[1,64], index: 2, kind: input, shape index: {}]
  %s3 = inlined_call_operand.vmem [shape: bf16[64,1], index: 3, kind: input, shape index: {}]
  %s4 = inlined_call_operand.<no memory space> [shape: f32[1,1], index: 4, kind: input, shape index: {}]
  %s5 = inlined_call_operand.vmem [shape: f32[8,1], index: 5, kind: output, shape index: {}]
  %s6 = sld [smem:[#allocation0]]
  $region30: #{ecommerce_forward.1} parent=0
    _
  %s8 = ssub.s32 1, %s6
  %s9 = scalar_select 0, %s8, %s6
  %v10 = vstv %s4
  %11 = vst [vmem:[#allocation2] sm:$0x1] %v10
  // Predicated region
  $region2: #{ecommerce_forward.1} parent=0 // pred_check
    _
  $region3: #{ecommerce_forward.1} parent=0 // pred_check_branch
    %13 = sbr.rel (0) target = $region5
  $region4: #{ecommerce_forward.1} parent=0 // pred_region
    _
  $region5: #{ecommerce_forward.1} parent=0 // pred_fallthru
    _
  // Predicated region
  $region6: #{ecommerce_forward.1} parent=0 // pred_check
    _
  $region7: #{ecommerce_forward.1} parent=0 // pred_check_branch
    %15 = sbr.rel (0) target = $region9
  $region8: #{ecommerce_forward.1} parent=0 // pred_region
    _
  $region9: #{ecommerce_forward.1} parent=0 // pred_fallthru
    _
  // Predicated region
  $region10: #{ecommerce_forward.1} parent=0 // pred_check
    _
  $region11: #{ecommerce_forward.1} parent=0 // pred_check_branch
    %17 = sbr.rel (0) target = $region13
  $region12: #{ecommerce_forward.1} parent=0 // pred_region
    _
  $region13: #{ecommerce_forward.1} parent=0 // pred_fallthru
    _
  // Predicated region
  $region14: #{ecommerce_forward.1} parent=0 // pred_check
    _
  $region15: #{ecommerce_forward.1} parent=0 // pred_check_branch
    %19 = sbr.rel (0) target = $region17
  $region16: #{ecommerce_forward.1} parent=0 // pred_region
    _
  $region17: #{ecommerce_forward.1} parent=0 // pred_fallthru
    _
  // Predicated region
  $region18: #{ecommerce_forward.1} parent=0 // pred_check
    _
  $region19: #{ecommerce_forward.1} parent=0 // pred_check_branch
    %21 = sbr.rel (0) target = $region21
  $region20: #{ecommerce_forward.1} parent=0 // pred_region
    _
  $region21: #{ecommerce_forward.1} parent=0 // pred_fallthru
    _
  %v23 = vld [vmem:[%s0] sm:$0xf]
  %v24 = vld [vmem:[%s1] sm:$0xf]
  %v25 = vld [vmem:[%s1 + $0x4] sm:$0x1]
  %v26 = vld [vmem:[%s2] sm:$0x1]
  %v28 = vlaneseq
  %v29 = vshrl.u32 %v28, 7
  %v30 = vsub.s32 0, %v29
  %v31 = vrot.slane %v26, %v30
  %v35 = vunpack.c.l.b16 %v24
  %v36 = vunpack.c.l.b16 %v25
  %v37 = vpack.c.b16 %v36, %v35
  %vm38 = vcmask 80896
  %v40 = vsel %vm38, %v23, 0
  %vm42 = vcmask 1044480
  %v44 = vsel %vm42, %v37, 0
  %46 = vmatprep.subr.bf16.mxu0 0
  %47 = vmatpush1.bf16.msra.mxu0 %v44
  %48 = vmatprep.subr.bf16.mxu0 0
  %49 = vmatpush1.bf16.msra.mxu0 0
  %50 = vmatprep.subr.bf16.mxu0 0
  %51 = vmatpush1.bf16.msra.mxu0 0
  %52 = vmatprep.subr.bf16.mxu0 0
  %53 = vmatpush1.bf16.msra.mxu0 0
  %54 = vmatprep.subr.bf16.mxu0 0
  %55 = vmatpush1.bf16.msra.mxu0 0
  %56 = vmatprep.subr.bf16.mxu0 0
  %57 = vmatpush1.bf16.msra.mxu0 0
  %58 = vmatprep.subr.bf16.mxu0 0
  %59 = vmatpush1.bf16.msra.mxu0 0
  %60 = vmatprep.subr.bf16.mxu0 0
  %61 = vmatpush1.bf16.msra.mxu0 0
  %62 = vmatprep.subr.bf16.mxu0 0
  %63 = vmatpush1.bf16.msra.mxu0 0
  %64 = vmatprep.subr.bf16.mxu0 0
  %65 = vmatpush1.bf16.msra.mxu0 0
  %66 = vmatprep.subr.bf16.mxu0 0
  %67 = vmatpush1.bf16.msra.mxu0 0
  %68 = vmatprep.subr.bf16.mxu0 0
  %69 = vmatpush1.bf16.msra.mxu0 0
  %70 = vmatprep.subr.bf16.mxu0 0
  %71 = vmatpush1.bf16.msra.mxu0 0
  %72 = vmatprep.subr.bf16.mxu0 0
  %73 = vmatpush1.bf16.msra.mxu0 0
  %74 = vmatprep.subr.bf16.mxu0 0
  %75 = vmatpush1.bf16.msra.mxu0 0
  %76 = vmatprep.subr.bf16.mxu0 0
  %77 = vmatpush1.bf16.msra.mxu0 0
  %78 = vmatprep.mubr.bf16.mxu0 0
  %79 = vmatmul.mubr.bf16.gmra.mrb[0].mxu0 %v40
  %v80 = vpop.f32.mrb[0].mxu0
  %v81 = vadd.f32 %v31, %v80
  %v82 = vpop.f32.mrb[0].mxu0
  %v83 = vpop.f32.mrb[0].mxu0
  %v84 = vpop.f32.mrb[0].mxu0
  %85 = vdwg.mxu0
  %v86 = vmax.f32 %v81, 0.0
  %v87 = vpack.c.bf16 %v86, %v86
  %v88 = vld [vmem:[%s3] sm:$0xf]
  %v89 = vld [vmem:[%s3 + $0x4] sm:$0xf]
  %v90 = vld [vmem:[%s3 + $0x8] sm:$0xf]
  %v91 = vld [vmem:[%s3 + $0xc] sm:$0xf]
  %v92 = vld [vmem:[%s3 + $0x10] sm:$0xf]
  %v93 = vld [vmem:[%s3 + $0x14] sm:$0xf]
  %v94 = vld [vmem:[%s3 + $0x18] sm:$0xf]
  %v95 = vld [vmem:[%s3 + $0x1c] sm:$0xf]
  %v96 = vld [vmem:[#allocation2] sm:$0x1]
  %v98 = vlaneseq
  %v99 = vshrl.u32 %v98, 7
  %v100 = vsub.s32 0, %v99
  %v101 = vrot.slane %v96, %v100
  %v111 = vunpack.c.l.b16 %v88
  %v112 = vunpack.c.l.b16 %v89
  %v113 = vunpack.c.l.b16 %v90
  %v114 = vunpack.c.l.b16 %v91
  %v115 = vunpack.c.l.b16 %v92
  %v116 = vunpack.c.l.b16 %v93
  %v117 = vunpack.c.l.b16 %v94
  %v118 = vunpack.c.l.b16 %v95
  %v119 = vpack.c.b16 %v112, %v111
  %v120 = vpack.c.b16 %v114, %v113
  %v121 = vpack.c.b16 %v116, %v115
  %v122 = vpack.c.b16 %v118, %v117
  %vm127 = vcmask 523264
  %v129 = vsel %vm127, %v87, 0
  %131 = vmatprep.subr.bf16.mxu0 0
  %132 = vmatpush1.bf16.msra.mxu0 %v119
  %133 = vmatprep.subr.bf16.mxu0 0
  %134 = vmatpush1.bf16.msra.mxu0 %v120
  %135 = vmatprep.subr.bf16.mxu0 0
  %136 = vmatpush1.bf16.msra.mxu0 %v121
  %137 = vmatprep.subr.bf16.mxu0 0
  %138 = vmatpush1.bf16.msra.mxu0 %v122
  %139 = vmatprep.subr.bf16.mxu0 0
  %140 = vmatpush1.bf16.msra.mxu0 0
  %141 = vmatprep.subr.bf16.mxu0 0
  %142 = vmatpush1.bf16.msra.mxu0 0
  %143 = vmatprep.subr.bf16.mxu0 0
  %144 = vmatpush1.bf16.msra.mxu0 0
  %145 = vmatprep.subr.bf16.mxu0 0
  %146 = vmatpush1.bf16.msra.mxu0 0
  %147 = vmatprep.subr.bf16.mxu0 0
  %148 = vmatpush1.bf16.msra.mxu0 0
  %149 = vmatprep.subr.bf16.mxu0 0
  %150 = vmatpush1.bf16.msra.mxu0 0
  %151 = vmatprep.subr.bf16.mxu0 0
  %152 = vmatpush1.bf16.msra.mxu0 0
  %153 = vmatprep.subr.bf16.mxu0 0
  %154 = vmatpush1.bf16.msra.mxu0 0
  %155 = vmatprep.subr.bf16.mxu0 0
  %156 = vmatpush1.bf16.msra.mxu0 0
  %157 = vmatprep.subr.bf16.mxu0 0
  %158 = vmatpush1.bf16.msra.mxu0 0
  %159 = vmatprep.subr.bf16.mxu0 0
  %160 = vmatpush1.bf16.msra.mxu0 0
  %161 = vmatprep.subr.bf16.mxu0 0
  %162 = vmatpush1.bf16.msra.mxu0 0
  %163 = vmatprep.mubr.bf16.mxu0 0
  %164 = vmatmul.mubr.bf16.gmra.mrb[0].mxu0 %v129
  %v165 = vpop.f32.mrb[0].mxu0
  %v166 = vadd.f32 %v101, %v165
  %v167 = vpop.f32.mrb[0].mxu0
  %v168 = vpop.f32.mrb[0].mxu0
  %v169 = vpop.f32.mrb[0].mxu0
  %170 = vdwg.mxu0
  %v171 = vxor.u32 %v166, 2147483648
  %v172 = vmul.f32 %v171, 1.442695
  %v173 = vpow.pop %v172
  %v174 = vadd.f32 %v173, 1.0
  %v175 = vrcp.pop %v174
  %v176 = vmul.f32 1.0, %v175
  %vm177 = vcmask 7168
  %178 = vst.msk [vmem:[%s5] sm:$0xff] %vm177, %v176
  // Predicated region
  $region22: #{ecommerce_forward.1} parent=0 // pred_check
    _
  $region23: #{ecommerce_forward.1} parent=0 // pred_check_branch
    %180 = sbr.rel (0) target = $region25
  $region24: #{ecommerce_forward.1} parent=0 // pred_region
    _
  $region25: #{ecommerce_forward.1} parent=0 // pred_fallthru
    _
  // Predicated region
  $region26: #{ecommerce_forward.1} parent=0 // pred_check
    _
  $region27: #{ecommerce_forward.1} parent=0 // pred_check_branch
    %182 = sbr.rel (0) target = $region29
  $region28: #{ecommerce_forward.1} parent=0 // pred_region
    _
  $region29: #{ecommerce_forward.1} parent=0 // pred_fallthru
    _

</llo_original>
